<compile_context>
chip_gen: v6e
topology: v6e:2x2x1
jax: 0.10.0
libtpu: 0.0.40
codegen_flags: <defaults>
</compile_context>

<pallas_src>
import jax
import jax.numpy as jnp
from jax.experimental import pallas as pl
from jax.experimental.pallas import tpu as pltpu

LN_EPS = 1e-5


def _round_up(x, m):
    return (x + m - 1) // m * m


def _num_tensorcores():
    """Best-effort TensorCores-per-device (v7x has 2, v5e/v6e have 1)."""
    try:
        kind = jax.devices()[0].device_kind.lower()
    except Exception:
        return 1
    return 2 if ("v7" in kind or "7x" in kind) else 1


def _pick_batch_tile(B, num_cores, cap=2048):
    """Batch (lane-axis) tile size.

    * B <= 128: a single full-extent tile (full-dim exemption from the 128 rule).
    * 1 TensorCore (v5e/v6e): one big tile (multiple of 128, capped) -- the grid
      is a purely serial loop, so fewer/larger steps amortize per-step overhead.
    * 2 TensorCores (v7x): an even number of grid steps so both cores get work.
    """
    if B <= 128:
        return B
    max_tile = max(128, (min(B, cap) // 128) * 128)
    if num_cores >= 2:
        steps = 2 * max(1, pl.cdiv(B, 2 * max_tile))     # even step count
        bb = _round_up(pl.cdiv(B, steps), 128)
        return min(bb, max_tile)
    return max_tile


def objectnn_kernel(
    x_ref,                       # (input_size, bb)   features x batch(lanes)
    w1_ref, w2_ref, w3_ref, w4_ref,   # PyTorch [out, in] layout
    wo_ref,                      # (output_size, hidden)
    vec_ref,                     # (hidden, 12): [b,g,be] x 4 layers (columns)
    bo_ref,                      # (output_size, 1)
    out_ref,                     # (output_size, bb)
):
    def block(h, w_ref, col):
        b = vec_ref[:, col:col + 1]
        g = vec_ref[:, col + 1:col + 2]
        be = vec_ref[:, col + 2:col + 3]
        # Linear: [out,in] @ [in, batch] -> [out, batch]; bias broadcasts over lanes.
        h = jnp.dot(w_ref[...], h, preferred_element_type=jnp.float32) + b
        # Two-pass LayerNorm over the feature (sublane) axis — exact PyTorch parity,
        # cheap here (feature dim is only `hidden` sublanes).
        mean = jnp.mean(h, axis=0, keepdims=True)
        d = h - mean
        var = jnp.mean(d * d, axis=0, keepdims=True)
        h = d * jax.lax.rsqrt(var + LN_EPS) * g + be
        return jnp.maximum(h, 0.0)  # ReLU

    h = block(x_ref[...], w1_ref, 0)
    h = block(h, w2_ref, 3)
    h = block(h, w3_ref, 6)
    h = block(h, w4_ref, 9)

    # Output linear; batch-on-lanes store is already lane-dense (no padding needed).
    out = jnp.dot(wo_ref[...], h, preferred_element_type=jnp.float32) + bo_ref[...]
    out_ref[...] = out.astype(out_ref.dtype)


def prepare_params(params):
    """One-time packing of PyTorch-layout params into kernel layout (hoisted
    out of the forward so it never runs on the steady-state path)."""
    H = params["w1"].shape[0]
    cols = []
    for i in (1, 2, 3, 4):
        cols += [params[f"b{i}"], params[f"g{i}"], params[f"be{i}"]]
    vec = jnp.stack(cols, axis=1)                      # (H, 12)
    kparams = {
        "w1": params["w1"], "w2": params["w2"],
        "w3": params["w3"], "w4": params["w4"],
        "wo": params["wo"],
        "vec": vec,
        "bo": params["bo"].reshape(-1, 1),             # (O, 1)
    }
    assert kparams["vec"].shape == (H, 12)
    return kparams


def objectnn_forward(x, kparams, *, block_batch_cap=2048):
    """x: [B, input_size] float32. kparams: output of prepare_params()."""
    B, input_size = x.shape
    H = kparams["w1"].shape[0]
    O = kparams["wo"].shape[0]

    # Transposed layout: batch on the 128-lane axis, features on sublanes.
    x_t = x.T                                          # (input_size, B)

    num_cores = _num_tensorcores()
    bb = _pick_batch_tile(B, num_cores, cap=block_batch_cap)
    grid = (pl.cdiv(B, bb),)

    # All parameters are tiny and stay VMEM-resident (constant block index).
    def full_spec(arr):
        return pl.BlockSpec(arr.shape, lambda i, _nd=arr.ndim: (0,) * _nd)

    param_order = ["w1", "w2", "w3", "w4", "wo", "vec", "bo"]
    param_vals = [kparams[k] for k in param_order]

    in_specs = [pl.BlockSpec((input_size, bb), lambda i: (0, i))]
    in_specs += [full_spec(p) for p in param_vals]
    out_specs = pl.BlockSpec((O, bb), lambda i: (0, i))

    # Advisory cost hint for XLA's scheduler.
    flops = 2 * B * (input_size * H + 3 * H * H + H * O)
    bytes_accessed = int(x.size * 4 + B * O * 4
                         + sum(int(p.size) * 4 for p in param_vals))
    cost = pl.CostEstimate(flops=flops, transcendentals=4 * B,
                           bytes_accessed=bytes_accessed)

    out_t = pl.pallas_call(
        objectnn_kernel,
        out_shape=jax.ShapeDtypeStruct((O, B), x.dtype),
        grid_spec=pltpu.PrefetchScalarGridSpec(
            num_scalar_prefetch=0,
            grid=grid,
            in_specs=in_specs,
            out_specs=out_specs,
        ),
        compiler_params=pltpu.CompilerParams(
            dimension_semantics=("parallel",),
        ),
        cost_estimate=cost,
    )(x_t, *param_vals)

    # Only the tiny (output_size, B) result is transposed back.
    return out_t.T


def init_params(key, input_size, hidden_size, output_size):
    """Deterministic synthetic parameter init, PyTorch nn.Linear layout/scales."""
    keys = jax.random.split(key, 10)

    def linear(kw, kb, fan_in, fan_out):
        bound = 1.0 / jnp.sqrt(jnp.float32(fan_in))
        w = jax.random.uniform(kw, (fan_out, fan_in), jnp.float32, -bound, bound)
        b = jax.random.uniform(kb, (fan_out,), jnp.float32, -bound, bound)
        return w, b

    params = {}
    params["w1"], params["b1"] = linear(keys[0], keys[1], input_size, hidden_size)
    params["w2"], params["b2"] = linear(keys[2], keys[3], hidden_size, hidden_size)
    params["w3"], params["b3"] = linear(keys[4], keys[5], hidden_size, hidden_size)
    params["w4"], params["b4"] = linear(keys[6], keys[7], hidden_size, hidden_size)
    params["wo"], params["bo"] = linear(keys[8], keys[9], hidden_size, output_size)

    # LayerNorm affine params: PyTorch default init is gamma=1, beta=0.
    for i in (1, 2, 3, 4):
        params[f"g{i}"] = jnp.ones((hidden_size,), jnp.float32)
        params[f"be{i}"] = jnp.zeros((hidden_size,), jnp.float32)
    return params


def objectnn_ref(x, params):
    """Pure-JAX reference (PyTorch semantics) for correctness check."""
    h = x
    for i in (1, 2, 3, 4):
        h = h @ params[f"w{i}"].T + params[f"b{i}"]
        mean = jnp.mean(h, axis=-1, keepdims=True)
        var = jnp.mean((h - mean) ** 2, axis=-1, keepdims=True)
        h = (h - mean) / jnp.sqrt(var + LN_EPS)
        h = h * params[f"g{i}"] + params[f"be{i}"]
        h = jnp.maximum(h, 0.0)
    return h @ params["wo"].T + params["bo"]


if __name__ == "__main__":
    input_size, hidden_size, output_size = 16, 32, 8
    batch = 256

    key = jax.random.PRNGKey(0)
    kx, kp = jax.random.split(key)
    x = jax.random.normal(kx, (batch, input_size), jnp.float32)
    params = init_params(kp, input_size, hidden_size, output_size)
    kparams = prepare_params(params)   # one-time packing, outside the hot path

    out = objectnn_forward(x, kparams)
    out = jax.block_until_ready(out)

    ref = objectnn_ref(x, params)
    assert out.shape == (batch, output_size)
    assert jnp.allclose(out, ref, atol=1e-3, rtol=1e-3), "mismatch vs reference"

    print("KERNEL_OK")
</pallas_src>

<mosaic_0001>
module attributes {stable_mosaic.version = 11 : i64} {
  func.func @objectnn_kernel(%arg0: i32, %arg1: memref<16x256xf32, #tpu.memory_space<vmem>>, %arg2: memref<32x16xf32, #tpu.memory_space<vmem>>, %arg3: memref<32x32xf32, #tpu.memory_space<vmem>>, %arg4: memref<32x32xf32, #tpu.memory_space<vmem>>, %arg5: memref<32x32xf32, #tpu.memory_space<vmem>>, %arg6: memref<8x32xf32, #tpu.memory_space<vmem>>, %arg7: memref<32x12xf32, #tpu.memory_space<vmem>>, %arg8: memref<8x1xf32, #tpu.memory_space<vmem>>, %arg9: memref<8x256xf32, #tpu.memory_space<vmem>>) attributes {dimension_semantics = [#tpu.dimension_semantics<parallel>], iteration_bounds = array<i64: 1>, scalar_prefetch = 0 : i64, scratch_operands = 0 : i64, tpu.core_type = #tpu.core_type<tc>, window_params = [{transform_indices = @transform_0, window_bounds = array<i64: 16, 256>}, {pipeline_mode = #tpu.pipeline_mode<synchronous>, transform_indices = @transform_1, window_bounds = array<i64: 32, 16>}, {pipeline_mode = #tpu.pipeline_mode<synchronous>, transform_indices = @transform_2, window_bounds = array<i64: 32, 32>}, {pipeline_mode = #tpu.pipeline_mode<synchronous>, transform_indices = @transform_3, window_bounds = array<i64: 32, 32>}, {pipeline_mode = #tpu.pipeline_mode<synchronous>, transform_indices = @transform_4, window_bounds = array<i64: 32, 32>}, {pipeline_mode = #tpu.pipeline_mode<synchronous>, transform_indices = @transform_5, window_bounds = array<i64: 8, 32>}, {pipeline_mode = #tpu.pipeline_mode<synchronous>, transform_indices = @transform_6, window_bounds = array<i64: 32, 12>}, {pipeline_mode = #tpu.pipeline_mode<synchronous>, transform_indices = @transform_7, window_bounds = array<i64: 8, 1>}, {transform_indices = @transform_8, window_bounds = array<i64: 8, 256>}]} {
    %c0 = arith.constant 0 : index
    %c0_0 = arith.constant 0 : index
    %0 = vector.load %arg1[%c0, %c0_0] : memref<16x256xf32, #tpu.memory_space<vmem>>, vector<16x256xf32>
    %c0_1 = arith.constant 0 : index
    %c0_2 = arith.constant 0 : index
    %1 = vector.load %arg7[%c0_1, %c0_2] : memref<32x12xf32, #tpu.memory_space<vmem>>, vector<32x1xf32>
    %c0_3 = arith.constant 0 : index
    %c1 = arith.constant 1 : index
    %2 = vector.load %arg7[%c0_3, %c1] : memref<32x12xf32, #tpu.memory_space<vmem>>, vector<32x1xf32>
    %c0_4 = arith.constant 0 : index
    %c2 = arith.constant 2 : index
    %3 = vector.load %arg7[%c0_4, %c2] : memref<32x12xf32, #tpu.memory_space<vmem>>, vector<32x1xf32>
    %c0_5 = arith.constant 0 : index
    %c0_6 = arith.constant 0 : index
    %4 = vector.load %arg2[%c0_5, %c0_6] : memref<32x16xf32, #tpu.memory_space<vmem>>, vector<32x16xf32>
    %cst = arith.constant dense<0.000000e+00> : vector<32x256xf32>
    %5 = tpu.matmul %4, %0, %cst {dimension_numbers = #tpu.dot_dimension_numbers<[1], [0], [0], [1], [0, 0, 1, 1], [], []>} : vector<32x16xf32>, vector<16x256xf32>, vector<32x256xf32> -> vector<32x256xf32>
    %6 = vector.broadcast %1 : vector<32x1xf32> to vector<32x256xf32>
    %7 = arith.addf %5, %6 : vector<32x256xf32>
    %cst_7 = arith.constant dense<0.000000e+00> : vector<256xf32>
    %8 = vector.multi_reduction <add>, %7, %cst_7 [0] : vector<32x256xf32> to vector<256xf32>
    %9 = vector.shape_cast %8 : vector<256xf32> to vector<1x256xf32>
    %cst_8 = arith.constant 3.200000e+01 : f32
    %10 = vector.broadcast %cst_8 : f32 to vector<1x256xf32>
    %11 = arith.divf %9, %10 : vector<1x256xf32>
    %12 = vector.broadcast %11 : vector<1x256xf32> to vector<32x256xf32>
    %13 = arith.subf %7, %12 : vector<32x256xf32>
    %14 = arith.mulf %13, %13 : vector<32x256xf32>
    %cst_9 = arith.constant dense<0.000000e+00> : vector<256xf32>
    %15 = vector.multi_reduction <add>, %14, %cst_9 [0] : vector<32x256xf32> to vector<256xf32>
    %16 = vector.shape_cast %15 : vector<256xf32> to vector<1x256xf32>
    %cst_10 = arith.constant 3.200000e+01 : f32
    %17 = vector.broadcast %cst_10 : f32 to vector<1x256xf32>
    %18 = arith.divf %16, %17 : vector<1x256xf32>
    %cst_11 = arith.constant 9.99999974E-6 : f32
    %19 = vector.broadcast %cst_11 : f32 to vector<1x256xf32>
    %20 = arith.addf %18, %19 : vector<1x256xf32>
    %21 = math.rsqrt %20 : vector<1x256xf32>
    %22 = vector.broadcast %21 : vector<1x256xf32> to vector<32x256xf32>
    %23 = arith.mulf %13, %22 : vector<32x256xf32>
    %24 = vector.broadcast %2 : vector<32x1xf32> to vector<32x256xf32>
    %25 = arith.mulf %23, %24 : vector<32x256xf32>
    %26 = vector.broadcast %3 : vector<32x1xf32> to vector<32x256xf32>
    %27 = arith.addf %25, %26 : vector<32x256xf32>
    %cst_12 = arith.constant 0.000000e+00 : f32
    %28 = vector.broadcast %cst_12 : f32 to vector<32x256xf32>
    %29 = arith.maximumf %27, %28 : vector<32x256xf32>
    %c0_13 = arith.constant 0 : index
    %c3 = arith.constant 3 : index
    %30 = vector.load %arg7[%c0_13, %c3] : memref<32x12xf32, #tpu.memory_space<vmem>>, vector<32x1xf32>
    %c0_14 = arith.constant 0 : index
    %c4 = arith.constant 4 : index
    %31 = vector.load %arg7[%c0_14, %c4] : memref<32x12xf32, #tpu.memory_space<vmem>>, vector<32x1xf32>
    %c0_15 = arith.constant 0 : index
    %c5 = arith.constant 5 : index
    %32 = vector.load %arg7[%c0_15, %c5] : memref<32x12xf32, #tpu.memory_space<vmem>>, vector<32x1xf32>
    %c0_16 = arith.constant 0 : index
    %c0_17 = arith.constant 0 : index
    %33 = vector.load %arg3[%c0_16, %c0_17] : memref<32x32xf32, #tpu.memory_space<vmem>>, vector<32x32xf32>
    %cst_18 = arith.constant dense<0.000000e+00> : vector<32x256xf32>
    %34 = tpu.matmul %33, %29, %cst_18 {dimension_numbers = #tpu.dot_dimension_numbers<[1], [0], [0], [1], [0, 0, 1, 1], [], []>} : vector<32x32xf32>, vector<32x256xf32>, vector<32x256xf32> -> vector<32x256xf32>
    %35 = vector.broadcast %30 : vector<32x1xf32> to vector<32x256xf32>
    %36 = arith.addf %34, %35 : vector<32x256xf32>
    %cst_19 = arith.constant dense<0.000000e+00> : vector<256xf32>
    %37 = vector.multi_reduction <add>, %36, %cst_19 [0] : vector<32x256xf32> to vector<256xf32>
    %38 = vector.shape_cast %37 : vector<256xf32> to vector<1x256xf32>
    %cst_20 = arith.constant 3.200000e+01 : f32
    %39 = vector.broadcast %cst_20 : f32 to vector<1x256xf32>
    %40 = arith.divf %38, %39 : vector<1x256xf32>
    %41 = vector.broadcast %40 : vector<1x256xf32> to vector<32x256xf32>
    %42 = arith.subf %36, %41 : vector<32x256xf32>
    %43 = arith.mulf %42, %42 : vector<32x256xf32>
    %cst_21 = arith.constant dense<0.000000e+00> : vector<256xf32>
    %44 = vector.multi_reduction <add>, %43, %cst_21 [0] : vector<32x256xf32> to vector<256xf32>
    %45 = vector.shape_cast %44 : vector<256xf32> to vector<1x256xf32>
    %cst_22 = arith.constant 3.200000e+01 : f32
    %46 = vector.broadcast %cst_22 : f32 to vector<1x256xf32>
    %47 = arith.divf %45, %46 : vector<1x256xf32>
    %cst_23 = arith.constant 9.99999974E-6 : f32
    %48 = vector.broadcast %cst_23 : f32 to vector<1x256xf32>
    %49 = arith.addf %47, %48 : vector<1x256xf32>
    %50 = math.rsqrt %49 : vector<1x256xf32>
    %51 = vector.broadcast %50 : vector<1x256xf32> to vector<32x256xf32>
    %52 = arith.mulf %42, %51 : vector<32x256xf32>
    %53 = vector.broadcast %31 : vector<32x1xf32> to vector<32x256xf32>
    %54 = arith.mulf %52, %53 : vector<32x256xf32>
    %55 = vector.broadcast %32 : vector<32x1xf32> to vector<32x256xf32>
    %56 = arith.addf %54, %55 : vector<32x256xf32>
    %cst_24 = arith.constant 0.000000e+00 : f32
    %57 = vector.broadcast %cst_24 : f32 to vector<32x256xf32>
    %58 = arith.maximumf %56, %57 : vector<32x256xf32>
    %c0_25 = arith.constant 0 : index
    %c6 = arith.constant 6 : index
    %59 = vector.load %arg7[%c0_25, %c6] : memref<32x12xf32, #tpu.memory_space<vmem>>, vector<32x1xf32>
    %c0_26 = arith.constant 0 : index
    %c7 = arith.constant 7 : index
    %60 = vector.load %arg7[%c0_26, %c7] : memref<32x12xf32, #tpu.memory_space<vmem>>, vector<32x1xf32>
    %c0_27 = arith.constant 0 : index
    %c8 = arith.constant 8 : index
    %61 = vector.load %arg7[%c0_27, %c8] : memref<32x12xf32, #tpu.memory_space<vmem>>, vector<32x1xf32>
    %c0_28 = arith.constant 0 : index
    %c0_29 = arith.constant 0 : index
    %62 = vector.load %arg4[%c0_28, %c0_29] : memref<32x32xf32, #tpu.memory_space<vmem>>, vector<32x32xf32>
    %cst_30 = arith.constant dense<0.000000e+00> : vector<32x256xf32>
    %63 = tpu.matmul %62, %58, %cst_30 {dimension_numbers = #tpu.dot_dimension_numbers<[1], [0], [0], [1], [0, 0, 1, 1], [], []>} : vector<32x32xf32>, vector<32x256xf32>, vector<32x256xf32> -> vector<32x256xf32>
    %64 = vector.broadcast %59 : vector<32x1xf32> to vector<32x256xf32>
    %65 = arith.addf %63, %64 : vector<32x256xf32>
    %cst_31 = arith.constant dense<0.000000e+00> : vector<256xf32>
    %66 = vector.multi_reduction <add>, %65, %cst_31 [0] : vector<32x256xf32> to vector<256xf32>
    %67 = vector.shape_cast %66 : vector<256xf32> to vector<1x256xf32>
    %cst_32 = arith.constant 3.200000e+01 : f32
    %68 = vector.broadcast %cst_32 : f32 to vector<1x256xf32>
    %69 = arith.divf %67, %68 : vector<1x256xf32>
    %70 = vector.broadcast %69 : vector<1x256xf32> to vector<32x256xf32>
    %71 = arith.subf %65, %70 : vector<32x256xf32>
    %72 = arith.mulf %71, %71 : vector<32x256xf32>
    %cst_33 = arith.constant dense<0.000000e+00> : vector<256xf32>
    %73 = vector.multi_reduction <add>, %72, %cst_33 [0] : vector<32x256xf32> to vector<256xf32>
    %74 = vector.shape_cast %73 : vector<256xf32> to vector<1x256xf32>
    %cst_34 = arith.constant 3.200000e+01 : f32
    %75 = vector.broadcast %cst_34 : f32 to vector<1x256xf32>
    %76 = arith.divf %74, %75 : vector<1x256xf32>
    %cst_35 = arith.constant 9.99999974E-6 : f32
    %77 = vector.broadcast %cst_35 : f32 to vector<1x256xf32>
    %78 = arith.addf %76, %77 : vector<1x256xf32>
    %79 = math.rsqrt %78 : vector<1x256xf32>
    %80 = vector.broadcast %79 : vector<1x256xf32> to vector<32x256xf32>
    %81 = arith.mulf %71, %80 : vector<32x256xf32>
    %82 = vector.broadcast %60 : vector<32x1xf32> to vector<32x256xf32>
    %83 = arith.mulf %81, %82 : vector<32x256xf32>
    %84 = vector.broadcast %61 : vector<32x1xf32> to vector<32x256xf32>
    %85 = arith.addf %83, %84 : vector<32x256xf32>
    %cst_36 = arith.constant 0.000000e+00 : f32
    %86 = vector.broadcast %cst_36 : f32 to vector<32x256xf32>
    %87 = arith.maximumf %85, %86 : vector<32x256xf32>
    %c0_37 = arith.constant 0 : index
    %c9 = arith.constant 9 : index
    %88 = vector.load %arg7[%c0_37, %c9] : memref<32x12xf32, #tpu.memory_space<vmem>>, vector<32x1xf32>
    %c0_38 = arith.constant 0 : index
    %c10 = arith.constant 10 : index
    %89 = vector.load %arg7[%c0_38, %c10] : memref<32x12xf32, #tpu.memory_space<vmem>>, vector<32x1xf32>
    %c0_39 = arith.constant 0 : index
    %c11 = arith.constant 11 : index
    %90 = vector.load %arg7[%c0_39, %c11] : memref<32x12xf32, #tpu.memory_space<vmem>>, vector<32x1xf32>
    %c0_40 = arith.constant 0 : index
    %c0_41 = arith.constant 0 : index
    %91 = vector.load %arg5[%c0_40, %c0_41] : memref<32x32xf32, #tpu.memory_space<vmem>>, vector<32x32xf32>
    %cst_42 = arith.constant dense<0.000000e+00> : vector<32x256xf32>
    %92 = tpu.matmul %91, %87, %cst_42 {dimension_numbers = #tpu.dot_dimension_numbers<[1], [0], [0], [1], [0, 0, 1, 1], [], []>} : vector<32x32xf32>, vector<32x256xf32>, vector<32x256xf32> -> vector<32x256xf32>
    %93 = vector.broadcast %88 : vector<32x1xf32> to vector<32x256xf32>
    %94 = arith.addf %92, %93 : vector<32x256xf32>
    %cst_43 = arith.constant dense<0.000000e+00> : vector<256xf32>
    %95 = vector.multi_reduction <add>, %94, %cst_43 [0] : vector<32x256xf32> to vector<256xf32>
    %96 = vector.shape_cast %95 : vector<256xf32> to vector<1x256xf32>
    %cst_44 = arith.constant 3.200000e+01 : f32
    %97 = vector.broadcast %cst_44 : f32 to vector<1x256xf32>
    %98 = arith.divf %96, %97 : vector<1x256xf32>
    %99 = vector.broadcast %98 : vector<1x256xf32> to vector<32x256xf32>
    %100 = arith.subf %94, %99 : vector<32x256xf32>
    %101 = arith.mulf %100, %100 : vector<32x256xf32>
    %cst_45 = arith.constant dense<0.000000e+00> : vector<256xf32>
    %102 = vector.multi_reduction <add>, %101, %cst_45 [0] : vector<32x256xf32> to vector<256xf32>
    %103 = vector.shape_cast %102 : vector<256xf32> to vector<1x256xf32>
    %cst_46 = arith.constant 3.200000e+01 : f32
    %104 = vector.broadcast %cst_46 : f32 to vector<1x256xf32>
    %105 = arith.divf %103, %104 : vector<1x256xf32>
    %cst_47 = arith.constant 9.99999974E-6 : f32
    %106 = vector.broadcast %cst_47 : f32 to vector<1x256xf32>
    %107 = arith.addf %105, %106 : vector<1x256xf32>
    %108 = math.rsqrt %107 : vector<1x256xf32>
    %109 = vector.broadcast %108 : vector<1x256xf32> to vector<32x256xf32>
    %110 = arith.mulf %100, %109 : vector<32x256xf32>
    %111 = vector.broadcast %89 : vector<32x1xf32> to vector<32x256xf32>
    %112 = arith.mulf %110, %111 : vector<32x256xf32>
    %113 = vector.broadcast %90 : vector<32x1xf32> to vector<32x256xf32>
    %114 = arith.addf %112, %113 : vector<32x256xf32>
    %cst_48 = arith.constant 0.000000e+00 : f32
    %115 = vector.broadcast %cst_48 : f32 to vector<32x256xf32>
    %116 = arith.maximumf %114, %115 : vector<32x256xf32>
    %c0_49 = arith.constant 0 : index
    %c0_50 = arith.constant 0 : index
    %117 = vector.load %arg6[%c0_49, %c0_50] : memref<8x32xf32, #tpu.memory_space<vmem>>, vector<8x32xf32>
    %cst_51 = arith.constant dense<0.000000e+00> : vector<8x256xf32>
    %118 = tpu.matmul %117, %116, %cst_51 {dimension_numbers = #tpu.dot_dimension_numbers<[1], [0], [0], [1], [0, 0, 1, 1], [], []>} : vector<8x32xf32>, vector<32x256xf32>, vector<8x256xf32> -> vector<8x256xf32>
    %c0_52 = arith.constant 0 : index
    %c0_53 = arith.constant 0 : index
    %119 = vector.load %arg8[%c0_52, %c0_53] : memref<8x1xf32, #tpu.memory_space<vmem>>, vector<8x1xf32>
    %120 = vector.broadcast %119 : vector<8x1xf32> to vector<8x256xf32>
    %121 = arith.addf %118, %120 : vector<8x256xf32>
    %c0_54 = arith.constant 0 : index
    %c0_55 = arith.constant 0 : index
    %122 = vector.load %arg9[%c0_54, %c0_55] : memref<8x256xf32, #tpu.memory_space<vmem>>, vector<8x256xf32>
    tpu.vector_store %arg9[%c0_54, %c0_55], %121 {strides = array<i32>} : memref<8x256xf32, #tpu.memory_space<vmem>>, vector<8x256xf32>,
    return
  }
  func.func @transform_0(%arg0: i32) -> (i32, i32) {
    %c0_i32 = arith.constant 0 : i32
    %c0_i32_0 = arith.constant 0 : i32
    return %c0_i32, %arg0 : i32, i32
  }
  func.func @transform_1(%arg0: i32) -> (i32, i32) {
    %c0_i32 = arith.constant 0 : i32
    %c0_i32_0 = arith.constant 0 : i32
    %c0_i32_1 = arith.constant 0 : i32
    return %c0_i32, %c0_i32_0 : i32, i32
  }
  func.func @transform_2(%arg0: i32) -> (i32, i32) {
    %c0_i32 = arith.constant 0 : i32
    %c0_i32_0 = arith.constant 0 : i32
    %c0_i32_1 = arith.constant 0 : i32
    return %c0_i32, %c0_i32_0 : i32, i32
  }
  func.func @transform_3(%arg0: i32) -> (i32, i32) {
    %c0_i32 = arith.constant 0 : i32
    %c0_i32_0 = arith.constant 0 : i32
    %c0_i32_1 = arith.constant 0 : i32
    return %c0_i32, %c0_i32_0 : i32, i32
  }
  func.func @transform_4(%arg0: i32) -> (i32, i32) {
    %c0_i32 = arith.constant 0 : i32
    %c0_i32_0 = arith.constant 0 : i32
    %c0_i32_1 = arith.constant 0 : i32
    return %c0_i32, %c0_i32_0 : i32, i32
  }
  func.func @transform_5(%arg0: i32) -> (i32, i32) {
    %c0_i32 = arith.constant 0 : i32
    %c0_i32_0 = arith.constant 0 : i32
    %c0_i32_1 = arith.constant 0 : i32
    return %c0_i32, %c0_i32_0 : i32, i32
  }
  func.func @transform_6(%arg0: i32) -> (i32, i32) {
    %c0_i32 = arith.constant 0 : i32
    %c0_i32_0 = arith.constant 0 : i32
    %c0_i32_1 = arith.constant 0 : i32
    return %c0_i32, %c0_i32_0 : i32, i32
  }
  func.func @transform_7(%arg0: i32) -> (i32, i32) {
    %c0_i32 = arith.constant 0 : i32
    %c0_i32_0 = arith.constant 0 : i32
    %c0_i32_1 = arith.constant 0 : i32
    return %c0_i32, %c0_i32_0 : i32, i32
  }
  func.func @transform_8(%arg0: i32) -> (i32, i32) {
    %c0_i32 = arith.constant 0 : i32
    %c0_i32_0 = arith.constant 0 : i32
    return %c0_i32, %arg0 : i32, i32
  }
}

</mosaic_0001>

<llo_original>
// kernel: tpu_custom_call.1
$region0: #{tpu_custom_call.1}
  #allocation0 [shape = 'u32[]', space=smem, size = 0x4, offset = 0x4, fixed_abs, tag = 'smem constant byte address 0x4 - core index']
  #allocation1 [shape = 'u32[144,128]{1,0:T(1,128)}', space=vmem, size = 0x12000, scoped, tag = 'internal scratch']
  %s0 = inlined_call_operand.vmem [shape: f32[16,256], index: 0, kind: input, shape index: {}]
  %s1 = inlined_call_operand.vmem [shape: f32[32,16], index: 1, kind: input, shape index: {}]
  %s2 = inlined_call_operand.vmem [shape: f32[32,32], index: 2, kind: input, shape index: {}]
  %s3 = inlined_call_operand.vmem [shape: f32[32,32], index: 3, kind: input, shape index: {}]
  %s4 = inlined_call_operand.hbm [shape: f32[32,32], index: 4, kind: input, shape index: {}]
  %s5 = inlined_call_operand.hbm [shape: f32[8,32], index: 5, kind: input, shape index: {}]
  %s6 = inlined_call_operand.vmem [shape: f32[32,12], index: 6, kind: input, shape index: {}]
  %s7 = inlined_call_operand.vmem [shape: f32[8,1], index: 7, kind: input, shape index: {}]
  %s8 = inlined_call_operand.hbm [shape: f32[8,256], index: 8, kind: output, shape index: {}]
  %s9 = sld [smem:[#allocation0]]
  $region50: #{tpu_custom_call.1} parent=0
    _
  %s11 = ssub.s32 1, %s9
  %s12 = scalar_select 0, %s11, %s9
  $region1: #{tpu_custom_call.1} parent=0
    #allocation2 [shape = 'u8[16384]{0}', space=vmem, size = 0x4000, scoped, tag = 'input window, operand 4, single buffered']
    #allocation3 [shape = 's32[1]{0}', space=sflag, size = 0x4, scoped, tag = 'scoped memory for tpu_custom_call.1']
    #allocation4 [shape = 's32[1]{0}', space=sflag, size = 0x4, scoped, tag = 'scoped memory for tpu_custom_call.1']
    #allocation5 [shape = 'u8[4096]{0}', space=vmem, size = 0x1000, scoped, tag = 'input window, operand 5, single buffered']
    #allocation6 [shape = 's32[1]{0}', space=sflag, size = 0x4, scoped, tag = 'scoped memory for tpu_custom_call.1']
    #allocation7 [shape = 'u8[8192]{0}', space=vmem, size = 0x2000, scoped, tag = 'output window, operand 0, single buffered']
    %13 = vsyncpa [#allocation3], 0
    %14 = vsyncpa [#allocation6], 0
    %15 = vsyncpa [#allocation4], 0
    // Predicated region
    $region2: #{tpu_custom_call.1} parent=1 // pred_check
      _
    $region3: #{tpu_custom_call.1} parent=1 // pred_check_branch
      %17 = sbr.rel (0) target = $region5
    $region4: #{tpu_custom_call.1} parent=1 // pred_region
      _
    $region5: #{tpu_custom_call.1} parent=1 // pred_fallthru
      _
    // Predicated region
    $region6: #{tpu_custom_call.1} parent=1 // pred_check
      _
    $region7: #{tpu_custom_call.1} parent=1 // pred_check_branch
      %19 = sbr.rel (0) target = $region9
    $region8: #{tpu_custom_call.1} parent=1 // pred_region
      _
    $region9: #{tpu_custom_call.1} parent=1 // pred_fallthru
      _
    // Predicated region
    $region10: #{tpu_custom_call.1} parent=1 // pred_check
      _
    $region11: #{tpu_custom_call.1} parent=1 // pred_check_branch
      %21 = sbr.rel (0) target = $region13
    $region12: #{tpu_custom_call.1} parent=1 // pred_region
      _
    $region13: #{tpu_custom_call.1} parent=1 // pred_fallthru
      _
    // Predicated region
    $region14: #{tpu_custom_call.1} parent=1 // pred_check
      _
    $region15: #{tpu_custom_call.1} parent=1 // pred_check_branch
      %23 = sbr.rel (0) target = $region17
    $region16: #{tpu_custom_call.1} parent=1 // pred_region
      _
    $region17: #{tpu_custom_call.1} parent=1 // pred_fallthru
      _
    // Predicated region
    $region18: #{tpu_custom_call.1} parent=1 // pred_check
      _
    $region19: #{tpu_custom_call.1} parent=1 // pred_check_branch
      %25 = sbr.rel (0) target = $region21
    $region20: #{tpu_custom_call.1} parent=1 // pred_region
      %s27 = ssub.s32 512, 512
      %28 = vsyncadd [#allocation3], %s27
      %s29 = sshll.u32 [#allocation2], 4
      %s30 = int_to_ptr.vmem [resolvable:$true] %s29
      %35 = dma.hbm_to_vmem [thread:$0]  %s4, 512, %s30, [#allocation3], 128, 128, 8
    $region21: #{tpu_custom_call.1} parent=1 // pred_fallthru
      _
    // Predicated region
    $region22: #{tpu_custom_call.1} parent=1 // pred_check
      _
    $region23: #{tpu_custom_call.1} parent=1 // pred_check_branch
      %37 = sbr.rel (0) target = $region25
    $region24: #{tpu_custom_call.1} parent=1 // pred_region
      %s39 = ssub.s32 128, 128
      %40 = vsyncadd [#allocation6], %s39
      %s42 = sshll.u32 [#allocation5], 4
      %s43 = int_to_ptr.vmem [resolvable:$true] %s42
      %45 = dma.hbm_to_vmem [thread:$0]  %s5, 128, %s43, [#allocation6]
    $region25: #{tpu_custom_call.1} parent=1 // pred_fallthru
      _
    // Predicated region
    $region26: #{tpu_custom_call.1} parent=1 // pred_check
      _
    $region27: #{tpu_custom_call.1} parent=1 // pred_check_branch
      %47 = sbr.rel (0) target = $region29
    $region28: #{tpu_custom_call.1} parent=1 // pred_region
      _
    $region29: #{tpu_custom_call.1} parent=1 // pred_fallthru
      _
    // Predicated region
    $region30: #{tpu_custom_call.1} parent=1 // pred_check
      _
    $region31: #{tpu_custom_call.1} parent=1 // pred_check_branch
      %49 = sbr.rel (0) target = $region33
    $region32: #{tpu_custom_call.1} parent=1 // pred_region
      _
    $region33: #{tpu_custom_call.1} parent=1 // pred_fallthru
      _
    // Predicated region
    $region34: #{tpu_custom_call.1} parent=1 // pred_check
      _
    $region35: #{tpu_custom_call.1} parent=1 // pred_check_branch
      %51 = sbr.rel (0) target = $region37
    $region36: #{tpu_custom_call.1} parent=1 // pred_region
      %52 = dma.done [#allocation3], 512
    $region37: #{tpu_custom_call.1} parent=1 // pred_fallthru
      _
    // Predicated region
    $region38: #{tpu_custom_call.1} parent=1 // pred_check
      _
    $region39: #{tpu_custom_call.1} parent=1 // pred_check_branch
      %54 = sbr.rel (0) target = $region41
    $region40: #{tpu_custom_call.1} parent=1 // pred_region
      %55 = dma.done [#allocation6], 128
    $region41: #{tpu_custom_call.1} parent=1 // pred_fallthru
      _
    %v56 = vld [vmem:[%s0] sm:$0xff]
    %v57 = vld [vmem:[%s0 + $0x8] sm:$0xff]
    %v58 = vld [vmem:[%s0 + $0x10] sm:$0xff]
    %v59 = vld [vmem:[%s0 + $0x18] sm:$0xff]
    %v60 = vld [vmem:[%s6] sm:$0xff]
    %v61 = vld [vmem:[%s6 + $0x8] sm:$0xff]
    %v62 = vld [vmem:[%s6 + $0x10] sm:$0xff]
    %v63 = vld [vmem:[%s6 + $0x18] sm:$0xff]
    %v64 = vld [vmem:[%s1] sm:$0xff]
    %v65 = vld [vmem:[%s1 + $0x8] sm:$0xff]
    %v66 = vld [vmem:[%s1 + $0x10] sm:$0xff]
    %v67 = vld [vmem:[%s1 + $0x18] sm:$0xff]
    %69 = vset.pattern.permute.xlu0 0
    %70 = vperm.xlu0 %69, %v60
    %v71 = vpop.permute.xlu0 %70
    %74 = vset.pattern.permute.xlu0 0
    %75 = vperm.xlu0 %74, %v61
    %v76 = vpop.permute.xlu0 %75
    %79 = vset.pattern.permute.xlu0 0
    %80 = vperm.xlu0 %79, %v62
    %v81 = vpop.permute.xlu0 %80
    %84 = vset.pattern.permute.xlu0 0
    %85 = vperm.xlu0 %84, %v63
    %v86 = vpop.permute.xlu0 %85
    %vm88 = vcmask 130048
    %v90 = vsel %vm88, %v64, 0
    %v93 = vsel %vm88, %v65, 0
    %v96 = vsel %vm88, %v66, 0
    %v99 = vsel %vm88, %v67, 0
    %101 = vmatprep.subr.mxu0 0.0
    %102 = vmatpush1.msra.mxu0 0.0
    %103 = vmatprep.subr.mxu0 0.0
    %104 = vmatpush1.msra.mxu0 0.0
    %105 = vmatprep.subr.mxu0 0.0
    %106 = vmatpush1.msra.mxu0 0.0
    %107 = vmatprep.subr.mxu0 0.0
    %108 = vmatpush1.msra.mxu0 0.0
    %109 = vmatprep.subr.mxu0 0.0
    %110 = vmatpush1.msra.mxu0 0.0
    %111 = vmatprep.subr.mxu0 0.0
    %112 = vmatpush1.msra.mxu0 0.0
    %113 = vmatprep.subr.mxu0 0.0
    %114 = vmatpush1.msra.mxu0 0.0
    %115 = vmatprep.subr.mxu0 0.0
    %116 = vmatpush1.msra.mxu0 0.0
    %117 = vmatprep.subr.mxu0 0.0
    %118 = vmatpush1.msra.mxu0 0.0
    %119 = vmatprep.subr.mxu0 0.0
    %120 = vmatpush1.msra.mxu0 0.0
    %121 = vmatprep.subr.mxu0 0.0
    %122 = vmatpush1.msra.mxu0 0.0
    %123 = vmatprep.subr.mxu0 0.0
    %124 = vmatpush1.msra.mxu0 0.0
    %125 = vmatprep.subr.mxu0 0.0
    %126 = vmatpush1.msra.mxu0 0.0
    %127 = vmatprep.subr.mxu0 0.0
    %128 = vmatpush1.msra.mxu0 0.0
    %129 = vmatprep.subr.mxu0 %v59
    %130 = vmatpush1.msra.mxu0 %v58
    %131 = vmatprep.subr.mxu0 %v57
    %132 = vmatpush1.msra.mxu0 %v56
    %133 = vmatprep.subr.mxu0 0.0
    %134 = vmatpush2.msra.mxu0 0.0
    %135 = vmatprep.subr.mxu0 0.0
    %136 = vmatpush2.msra.mxu0 0.0
    %137 = vmatprep.subr.mxu0 0.0
    %138 = vmatpush2.msra.mxu0 0.0
    %139 = vmatprep.subr.mxu0 0.0
    %140 = vmatpush2.msra.mxu0 0.0
    %141 = vmatprep.subr.mxu0 0.0
    %142 = vmatpush2.msra.mxu0 0.0
    %143 = vmatprep.subr.mxu0 0.0
    %144 = vmatpush2.msra.mxu0 0.0
    %145 = vmatprep.subr.mxu0 0.0
    %146 = vmatpush2.msra.mxu0 0.0
    %147 = vmatprep.subr.mxu0 0.0
    %148 = vmatpush2.msra.mxu0 0.0
    %149 = vmatprep.subr.mxu0 0.0
    %150 = vmatpush2.msra.mxu0 0.0
    %151 = vmatprep.subr.mxu0 0.0
    %152 = vmatpush2.msra.mxu0 0.0
    %153 = vmatprep.subr.mxu0 0.0
    %154 = vmatpush2.msra.mxu0 0.0
    %155 = vmatprep.subr.mxu0 0.0
    %156 = vmatpush2.msra.mxu0 0.0
    %157 = vmatprep.subr.mxu0 0.0
    %158 = vmatpush2.msra.mxu0 0.0
    %159 = vmatprep.subr.mxu0 0.0
    %160 = vmatpush2.msra.mxu0 0.0
    %161 = vmatprep.subr.mxu0 0.0
    %162 = vmatpush2.msra.mxu0 0.0
    %163 = vmatprep.subr.mxu0 0.0
    %164 = vmatpush2.msra.mxu0 0.0
    %165 = vmatprep.mubr.f32.mxu0 0.0
    %166 = vmatmul.mubr.f32.gmra.mxu0 %v90
    %v167 = vpop.f32.mrf.mxu0
    %v168 = vadd.f32 %v71, %v167
    %v169 = vpop.f32.mrf.mxu0
    %v170 = vadd.f32 %v71, %v169
    %171 = vmatprep.mubr.f32.mxu0 0.0
    %172 = vmatmul.mubr.f32.gmra.mxu0 %v93
    %v173 = vpop.f32.mrf.mxu0
    %v174 = vadd.f32 %v76, %v173
    %v175 = vpop.f32.mrf.mxu0
    %v176 = vadd.f32 %v76, %v175
    %177 = vmatprep.mubr.f32.mxu0 0.0
    %178 = vmatmul.mubr.f32.gmra.mxu0 %v96
    %v179 = vpop.f32.mrf.mxu0
    %v180 = vadd.f32 %v81, %v179
    %v181 = vpop.f32.mrf.mxu0
    %v182 = vadd.f32 %v81, %v181
    %183 = vmatprep.mubr.f32.mxu0 0.0
    %184 = vmatmul.mubr.f32.gmra.mxu0 %v99
    %v185 = vpop.f32.mrf.mxu0
    %v186 = vadd.f32 %v86, %v185
    %v187 = vpop.f32.mrf.mxu0
    %v188 = vadd.f32 %v86, %v187
    %189 = vdwg.mxu0
    %v190 = vadd.f32 %v168, %v174
    %v191 = vadd.f32 %v190, %v180
    %v192 = vadd.f32 %v191, %v186
    %v193 = vrot.slane %v192, 4
    %v194 = vadd.f32 %v192, %v193
    %v195 = vrot.slane %v194, 2
    %v196 = vadd.f32 %v194, %v195
    %v197 = vrot.slane %v196, 1
    %v198 = vadd.f32 %v196, %v197
    %v199 = vadd.f32 %v170, %v176
    %v200 = vadd.f32 %v199, %v182
    %v201 = vadd.f32 %v200, %v188
    %v202 = vrot.slane %v201, 4
    %v203 = vadd.f32 %v201, %v202
    %v204 = vrot.slane %v203, 2
    %v205 = vadd.f32 %v203, %v204
    %v206 = vrot.slane %v205, 1
    %v207 = vadd.f32 %v205, %v206
    %v208 = vrcp.pop 32.0
    %v209 = vmul.f32 %v198, %v208
    %v210 = vmul.f32 %v207, %v208
    %v211 = vsub.f32 %v168, %v209
    %v212 = vsub.f32 %v170, %v210
    %v213 = vsub.f32 %v174, %v209
    %v214 = vsub.f32 %v176, %v210
    %v215 = vsub.f32 %v180, %v209
    %v216 = vsub.f32 %v182, %v210
    %v217 = vsub.f32 %v186, %v209
    %v218 = vsub.f32 %v188, %v210
    %v219 = vmul.f32 %v211, %v211
    %v220 = vmul.f32 %v212, %v212
    %v221 = vmul.f32 %v213, %v213
    %v222 = vmul.f32 %v214, %v214
    %v223 = vmul.f32 %v215, %v215
    %v224 = vmul.f32 %v216, %v216
    %v225 = vmul.f32 %v217, %v217
    %v226 = vmul.f32 %v218, %v218
    %v227 = vadd.f32 %v219, %v221
    %v228 = vadd.f32 %v227, %v223
    %v229 = vadd.f32 %v228, %v225
    %v230 = vrot.slane %v229, 4
    %v231 = vadd.f32 %v229, %v230
    %v232 = vrot.slane %v231, 2
    %v233 = vadd.f32 %v231, %v232
    %v234 = vrot.slane %v233, 1
    %v235 = vadd.f32 %v233, %v234
    %v236 = vadd.f32 %v220, %v222
    %v237 = vadd.f32 %v236, %v224
    %v238 = vadd.f32 %v237, %v226
    %v239 = vrot.slane %v238, 4
    %v240 = vadd.f32 %v238, %v239
    %v241 = vrot.slane %v240, 2
    %v242 = vadd.f32 %v240, %v241
    %v243 = vrot.slane %v242, 1
    %v244 = vadd.f32 %v242, %v243
    %v245 = vmul.f32 %v235, %v208
    %v246 = vmul.f32 %v244, %v208
    %v247 = vadd.f32 %v245, 1e-05
    %v248 = vadd.f32 %v246, 1e-05
    %v249 = vrsqrt.pop %v247
    %v250 = vrsqrt.pop %v248
    %v251 = vmul.f32 %v211, %v249
    %v252 = vmul.f32 %v212, %v250
    %v253 = vmul.f32 %v213, %v249
    %v254 = vmul.f32 %v214, %v250
    %v255 = vmul.f32 %v215, %v249
    %v256 = vmul.f32 %v216, %v250
    %v257 = vmul.f32 %v217, %v249
    %v258 = vmul.f32 %v218, %v250
    %259 = vset.pattern.permute.xlu0 1
    %260 = vperm.xlu0 %259, %v60
    %v261 = vpop.permute.xlu0 %260
    %263 = vset.pattern.permute.xlu0 1
    %264 = vperm.xlu0 %263, %v61
    %v265 = vpop.permute.xlu0 %264
    %267 = vset.pattern.permute.xlu0 1
    %268 = vperm.xlu0 %267, %v62
    %v269 = vpop.permute.xlu0 %268
    %271 = vset.pattern.permute.xlu0 1
    %272 = vperm.xlu0 %271, %v63
    %v273 = vpop.permute.xlu0 %272
    %v275 = vmul.f32 %v251, %v261
    %v276 = vmul.f32 %v252, %v261
    %v277 = vmul.f32 %v253, %v265
    %v278 = vmul.f32 %v254, %v265
    %v279 = vmul.f32 %v255, %v269
    %v280 = vmul.f32 %v256, %v269
    %v281 = vmul.f32 %v257, %v273
    %v282 = vmul.f32 %v258, %v273
    %283 = vset.pattern.permute.xlu0 2
    %284 = vperm.xlu0 %283, %v60
    %v285 = vpop.permute.xlu0 %284
    %287 = vset.pattern.permute.xlu0 2
    %288 = vperm.xlu0 %287, %v61
    %v289 = vpop.permute.xlu0 %288
    %291 = vset.pattern.permute.xlu0 2
    %292 = vperm.xlu0 %291, %v62
    %v293 = vpop.permute.xlu0 %292
    %295 = vset.pattern.permute.xlu0 2
    %296 = vperm.xlu0 %295, %v63
    %v297 = vpop.permute.xlu0 %296
    %v299 = vadd.f32 %v275, %v285
    %v300 = vadd.f32 %v276, %v285
    %v301 = vadd.f32 %v277, %v289
    %v302 = vadd.f32 %v278, %v289
    %v303 = vadd.f32 %v279, %v293
    %v304 = vadd.f32 %v280, %v293
    %v305 = vadd.f32 %v281, %v297
    %v306 = vadd.f32 %v282, %v297
    %v307 = vmax.f32 %v299, 0.0
    %v308 = vmax.f32 %v300, 0.0
    %v309 = vmax.f32 %v301, 0.0
    %v310 = vmax.f32 %v302, 0.0
    %v311 = vmax.f32 %v303, 0.0
    %v312 = vmax.f32 %v304, 0.0
    %v313 = vmax.f32 %v305, 0.0
    %v314 = vmax.f32 %v306, 0.0
    %v315 = vld [vmem:[%s2] sm:$0xff]
    %v316 = vld [vmem:[%s2 + $0x8] sm:$0xff]
    %v317 = vld [vmem:[%s2 + $0x10] sm:$0xff]
    %v318 = vld [vmem:[%s2 + $0x18] sm:$0xff]
    %319 = vset.pattern.permute.xlu0 3
    %320 = vperm.xlu0 %319, %v60
    %v321 = vpop.permute.xlu0 %320
    %323 = vset.pattern.permute.xlu0 3
    %324 = vperm.xlu0 %323, %v61
    %v325 = vpop.permute.xlu0 %324
    %327 = vset.pattern.permute.xlu0 3
    %328 = vperm.xlu0 %327, %v62
    %v329 = vpop.permute.xlu0 %328
    %331 = vset.pattern.permute.xlu0 3
    %332 = vperm.xlu0 %331, %v63
    %v333 = vpop.permute.xlu0 %332
    %vm335 = vcmask 261120
    %v337 = vsel %vm335, %v315, 0
    %v340 = vsel %vm335, %v316, 0
    %v343 = vsel %vm335, %v317, 0
    %v346 = vsel %vm335, %v318, 0
    %348 = vmatprep.subr.mxu0 0.0
    %349 = vmatpush1.msra.mxu0 0.0
    %350 = vmatprep.subr.mxu0 0.0
    %351 = vmatpush1.msra.mxu0 0.0
    %352 = vmatprep.subr.mxu0 0.0
    %353 = vmatpush1.msra.mxu0 0.0
    %354 = vmatprep.subr.mxu0 0.0
    %355 = vmatpush1.msra.mxu0 0.0
    %356 = vmatprep.subr.mxu0 0.0
    %357 = vmatpush1.msra.mxu0 0.0
    %358 = vmatprep.subr.mxu0 0.0
    %359 = vmatpush1.msra.mxu0 0.0
    %360 = vmatprep.subr.mxu0 0.0
    %361 = vmatpush1.msra.mxu0 0.0
    %362 = vmatprep.subr.mxu0 0.0
    %363 = vmatpush1.msra.mxu0 0.0
    %364 = vmatprep.subr.mxu0 0.0
    %365 = vmatpush1.msra.mxu0 0.0
    %366 = vmatprep.subr.mxu0 0.0
    %367 = vmatpush1.msra.mxu0 0.0
    %368 = vmatprep.subr.mxu0 0.0
    %369 = vmatpush1.msra.mxu0 0.0
    %370 = vmatprep.subr.mxu0 0.0
    %371 = vmatpush1.msra.mxu0 0.0
    %372 = vmatprep.subr.mxu0 %v314
    %373 = vmatpush1.msra.mxu0 %v313
    %374 = vmatprep.subr.mxu0 %v312
    %375 = vmatpush1.msra.mxu0 %v311
    %376 = vmatprep.subr.mxu0 %v310
    %377 = vmatpush1.msra.mxu0 %v309
    %378 = vmatprep.subr.mxu0 %v308
    %379 = vmatpush1.msra.mxu0 %v307
    %380 = vmatprep.subr.mxu0 0.0
    %381 = vmatpush2.msra.mxu0 0.0
    %382 = vmatprep.subr.mxu0 0.0
    %383 = vmatpush2.msra.mxu0 0.0
    %384 = vmatprep.subr.mxu0 0.0
    %385 = vmatpush2.msra.mxu0 0.0
    %386 = vmatprep.subr.mxu0 0.0
    %387 = vmatpush2.msra.mxu0 0.0
    %388 = vmatprep.subr.mxu0 0.0
    %389 = vmatpush2.msra.mxu0 0.0
    %390 = vmatprep.subr.mxu0 0.0
    %391 = vmatpush2.msra.mxu0 0.0
    %392 = vmatprep.subr.mxu0 0.0
    %393 = vmatpush2.msra.mxu0 0.0
    %394 = vmatprep.subr.mxu0 0.0
    %395 = vmatpush2.msra.mxu0 0.0
    %396 = vmatprep.subr.mxu0 0.0
    %397 = vmatpush2.msra.mxu0 0.0
    %398 = vmatprep.subr.mxu0 0.0
    %399 = vmatpush2.msra.mxu0 0.0
    %400 = vmatprep.subr.mxu0 0.0
    %401 = vmatpush2.msra.mxu0 0.0
    %402 = vmatprep.subr.mxu0 0.0
    %403 = vmatpush2.msra.mxu0 0.0
    %404 = vmatprep.subr.mxu0 0.0
    %405 = vmatpush2.msra.mxu0 0.0
    %406 = vmatprep.subr.mxu0 0.0
    %407 = vmatpush2.msra.mxu0 0.0
    %408 = vmatprep.subr.mxu0 0.0
    %409 = vmatpush2.msra.mxu0 0.0
    %410 = vmatprep.subr.mxu0 0.0
    %411 = vmatpush2.msra.mxu0 0.0
    %412 = vmatprep.mubr.f32.mxu0 0.0
    %413 = vmatmul.mubr.f32.gmra.mxu0 %v337
    %v414 = vpop.f32.mrf.mxu0
    %v415 = vadd.f32 %v321, %v414
    %v416 = vpop.f32.mrf.mxu0
    %v417 = vadd.f32 %v321, %v416
    %418 = vmatprep.mubr.f32.mxu0 0.0
    %419 = vmatmul.mubr.f32.gmra.mxu0 %v340
    %v420 = vpop.f32.mrf.mxu0
    %v421 = vadd.f32 %v325, %v420
    %v422 = vpop.f32.mrf.mxu0
    %v423 = vadd.f32 %v325, %v422
    %424 = vmatprep.mubr.f32.mxu0 0.0
    %425 = vmatmul.mubr.f32.gmra.mxu0 %v343
    %v426 = vpop.f32.mrf.mxu0
    %v427 = vadd.f32 %v329, %v426
    %v428 = vpop.f32.mrf.mxu0
    %v429 = vadd.f32 %v329, %v428
    %430 = vmatprep.mubr.f32.mxu0 0.0
    %431 = vmatmul.mubr.f32.gmra.mxu0 %v346
    %v432 = vpop.f32.mrf.mxu0
    %v433 = vadd.f32 %v333, %v432
    %v434 = vpop.f32.mrf.mxu0
    %v435 = vadd.f32 %v333, %v434
    %436 = vdwg.mxu0
    %v437 = vadd.f32 %v415, %v421
    %v438 = vadd.f32 %v437, %v427
    %v439 = vadd.f32 %v438, %v433
    %v440 = vrot.slane %v439, 4
    %v441 = vadd.f32 %v439, %v440
    %v442 = vrot.slane %v441, 2
    %v443 = vadd.f32 %v441, %v442
    %v444 = vrot.slane %v443, 1
    %v445 = vadd.f32 %v443, %v444
    %v446 = vadd.f32 %v417, %v423
    %v447 = vadd.f32 %v446, %v429
    %v448 = vadd.f32 %v447, %v435
    %v449 = vrot.slane %v448, 4
    %v450 = vadd.f32 %v448, %v449
    %v451 = vrot.slane %v450, 2
    %v452 = vadd.f32 %v450, %v451
    %v453 = vrot.slane %v452, 1
    %v454 = vadd.f32 %v452, %v453
    %v455 = vmul.f32 %v445, %v208
    %v456 = vmul.f32 %v454, %v208
    %v457 = vsub.f32 %v415, %v455
    %v458 = vsub.f32 %v417, %v456
    %v459 = vsub.f32 %v421, %v455
    %v460 = vsub.f32 %v423, %v456
    %v461 = vsub.f32 %v427, %v455
    %v462 = vsub.f32 %v429, %v456
    %v463 = vsub.f32 %v433, %v455
    %v464 = vsub.f32 %v435, %v456
    %v465 = vmul.f32 %v457, %v457
    %v466 = vmul.f32 %v458, %v458
    %v467 = vmul.f32 %v459, %v459
    %v468 = vmul.f32 %v460, %v460
    %v469 = vmul.f32 %v461, %v461
    %v470 = vmul.f32 %v462, %v462
    %v471 = vmul.f32 %v463, %v463
    %v472 = vmul.f32 %v464, %v464
    %v473 = vadd.f32 %v465, %v467
    %v474 = vadd.f32 %v473, %v469
    %v475 = vadd.f32 %v474, %v471
    %v476 = vrot.slane %v475, 4
    %v477 = vadd.f32 %v475, %v476
    %v478 = vrot.slane %v477, 2
    %v479 = vadd.f32 %v477, %v478
    %v480 = vrot.slane %v479, 1
    %v481 = vadd.f32 %v479, %v480
    %v482 = vadd.f32 %v466, %v468
    %v483 = vadd.f32 %v482, %v470
    %v484 = vadd.f32 %v483, %v472
    %v485 = vrot.slane %v484, 4
    %v486 = vadd.f32 %v484, %v485
    %v487 = vrot.slane %v486, 2
    %v488 = vadd.f32 %v486, %v487
    %v489 = vrot.slane %v488, 1
    %v490 = vadd.f32 %v488, %v489
    %v491 = vmul.f32 %v481, %v208
    %v492 = vmul.f32 %v490, %v208
    %v493 = vadd.f32 %v491, 1e-05
    %v494 = vadd.f32 %v492, 1e-05
    %v495 = vrsqrt.pop %v493
    %v496 = vrsqrt.pop %v494
    %v497 = vmul.f32 %v457, %v495
    %v498 = vmul.f32 %v458, %v496
    %v499 = vmul.f32 %v459, %v495
    %v500 = vmul.f32 %v460, %v496
    %v501 = vmul.f32 %v461, %v495
    %v502 = vmul.f32 %v462, %v496
    %v503 = vmul.f32 %v463, %v495
    %v504 = vmul.f32 %v464, %v496
    %505 = vset.pattern.permute.xlu0 4
    %506 = vperm.xlu0 %505, %v60
    %v507 = vpop.permute.xlu0 %506
    %509 = vset.pattern.permute.xlu0 4
    %510 = vperm.xlu0 %509, %v61
    %v511 = vpop.permute.xlu0 %510
    %513 = vset.pattern.permute.xlu0 4
    %514 = vperm.xlu0 %513, %v62
    %v515 = vpop.permute.xlu0 %514
    %517 = vset.pattern.permute.xlu0 4
    %518 = vperm.xlu0 %517, %v63
    %v519 = vpop.permute.xlu0 %518
    %v521 = vmul.f32 %v497, %v507
    %v522 = vmul.f32 %v498, %v507
    %v523 = vmul.f32 %v499, %v511
    %v524 = vmul.f32 %v500, %v511
    %v525 = vmul.f32 %v501, %v515
    %v526 = vmul.f32 %v502, %v515
    %v527 = vmul.f32 %v503, %v519
    %v528 = vmul.f32 %v504, %v519
    %529 = vset.pattern.permute.xlu0 5
    %530 = vperm.xlu0 %529, %v60
    %v531 = vpop.permute.xlu0 %530
    %533 = vset.pattern.permute.xlu0 5
    %534 = vperm.xlu0 %533, %v61
    %v535 = vpop.permute.xlu0 %534
    %537 = vset.pattern.permute.xlu0 5
    %538 = vperm.xlu0 %537, %v62
    %v539 = vpop.permute.xlu0 %538
    %541 = vset.pattern.permute.xlu0 5
    %542 = vperm.xlu0 %541, %v63
    %v543 = vpop.permute.xlu0 %542
    %v545 = vadd.f32 %v521, %v531
    %v546 = vadd.f32 %v522, %v531
    %v547 = vadd.f32 %v523, %v535
    %v548 = vadd.f32 %v524, %v535
    %v549 = vadd.f32 %v525, %v539
    %v550 = vadd.f32 %v526, %v539
    %v551 = vadd.f32 %v527, %v543
    %v552 = vadd.f32 %v528, %v543
    %v553 = vmax.f32 %v545, 0.0
    %v554 = vmax.f32 %v546, 0.0
    %v555 = vmax.f32 %v547, 0.0
    %v556 = vmax.f32 %v548, 0.0
    %v557 = vmax.f32 %v549, 0.0
    %v558 = vmax.f32 %v550, 0.0
    %v559 = vmax.f32 %v551, 0.0
    %v560 = vmax.f32 %v552, 0.0
    %v561 = vld [vmem:[%s3] sm:$0xff]
    %v562 = vld [vmem:[%s3 + $0x8] sm:$0xff]
    %v563 = vld [vmem:[%s3 + $0x10] sm:$0xff]
    %v564 = vld [vmem:[%s3 + $0x18] sm:$0xff]
    %565 = vset.pattern.permute.xlu0 6
    %566 = vperm.xlu0 %565, %v60
    %v567 = vpop.permute.xlu0 %566
    %569 = vset.pattern.permute.xlu0 6
    %570 = vperm.xlu0 %569, %v61
    %v571 = vpop.permute.xlu0 %570
    %573 = vset.pattern.permute.xlu0 6
    %574 = vperm.xlu0 %573, %v62
    %v575 = vpop.permute.xlu0 %574
    %577 = vset.pattern.permute.xlu0 6
    %578 = vperm.xlu0 %577, %v63
    %v579 = vpop.permute.xlu0 %578
    %v582 = vsel %vm335, %v561, 0
    %v585 = vsel %vm335, %v562, 0
    %v588 = vsel %vm335, %v563, 0
    %v591 = vsel %vm335, %v564, 0
    %593 = vmatprep.subr.mxu0 0.0
    %594 = vmatpush1.msra.mxu0 0.0
    %595 = vmatprep.subr.mxu0 0.0
    %596 = vmatpush1.msra.mxu0 0.0
    %597 = vmatprep.subr.mxu0 0.0
    %598 = vmatpush1.msra.mxu0 0.0
    %599 = vmatprep.subr.mxu0 0.0
    %600 = vmatpush1.msra.mxu0 0.0
    %601 = vmatprep.subr.mxu0 0.0
    %602 = vmatpush1.msra.mxu0 0.0
    %603 = vmatprep.subr.mxu0 0.0
    %604 = vmatpush1.msra.mxu0 0.0
    %605 = vmatprep.subr.mxu0 0.0
    %606 = vmatpush1.msra.mxu0 0.0
    %607 = vmatprep.subr.mxu0 0.0
    %608 = vmatpush1.msra.mxu0 0.0
    %609 = vmatprep.subr.mxu0 0.0
    %610 = vmatpush1.msra.mxu0 0.0
    %611 = vmatprep.subr.mxu0 0.0
    %612 = vmatpush1.msra.mxu0 0.0
    %613 = vmatprep.subr.mxu0 0.0
    %614 = vmatpush1.msra.mxu0 0.0
    %615 = vmatprep.subr.mxu0 0.0
    %616 = vmatpush1.msra.mxu0 0.0
    %617 = vmatprep.subr.mxu0 %v560
    %618 = vmatpush1.msra.mxu0 %v559
    %619 = vmatprep.subr.mxu0 %v558
    %620 = vmatpush1.msra.mxu0 %v557
    %621 = vmatprep.subr.mxu0 %v556
    %622 = vmatpush1.msra.mxu0 %v555
    %623 = vmatprep.subr.mxu0 %v554
    %624 = vmatpush1.msra.mxu0 %v553
    %625 = vmatprep.subr.mxu0 0.0
    %626 = vmatpush2.msra.mxu0 0.0
    %627 = vmatprep.subr.mxu0 0.0
    %628 = vmatpush2.msra.mxu0 0.0
    %629 = vmatprep.subr.mxu0 0.0
    %630 = vmatpush2.msra.mxu0 0.0
    %631 = vmatprep.subr.mxu0 0.0
    %632 = vmatpush2.msra.mxu0 0.0
    %633 = vmatprep.subr.mxu0 0.0
    %634 = vmatpush2.msra.mxu0 0.0
    %635 = vmatprep.subr.mxu0 0.0
    %636 = vmatpush2.msra.mxu0 0.0
    %637 = vmatprep.subr.mxu0 0.0
    %638 = vmatpush2.msra.mxu0 0.0
    %639 = vmatprep.subr.mxu0 0.0
    %640 = vmatpush2.msra.mxu0 0.0
    %641 = vmatprep.subr.mxu0 0.0
    %642 = vmatpush2.msra.mxu0 0.0
    %643 = vmatprep.subr.mxu0 0.0
    %644 = vmatpush2.msra.mxu0 0.0
    %645 = vmatprep.subr.mxu0 0.0
    %646 = vmatpush2.msra.mxu0 0.0
    %647 = vmatprep.subr.mxu0 0.0
    %648 = vmatpush2.msra.mxu0 0.0
    %649 = vmatprep.subr.mxu0 0.0
    %650 = vmatpush2.msra.mxu0 0.0
    %651 = vmatprep.subr.mxu0 0.0
    %652 = vmatpush2.msra.mxu0 0.0
    %653 = vmatprep.subr.mxu0 0.0
    %654 = vmatpush2.msra.mxu0 0.0
    %655 = vmatprep.subr.mxu0 0.0
    %656 = vmatpush2.msra.mxu0 0.0
    %657 = vmatprep.mubr.f32.mxu0 0.0
    %658 = vmatmul.mubr.f32.gmra.mxu0 %v582
    %v659 = vpop.f32.mrf.mxu0
    %v660 = vadd.f32 %v567, %v659
    %v661 = vpop.f32.mrf.mxu0
    %v662 = vadd.f32 %v567, %v661
    %663 = vmatprep.mubr.f32.mxu0 0.0
    %664 = vmatmul.mubr.f32.gmra.mxu0 %v585
    %v665 = vpop.f32.mrf.mxu0
    %v666 = vadd.f32 %v571, %v665
    %v667 = vpop.f32.mrf.mxu0
    %v668 = vadd.f32 %v571, %v667
    %669 = vmatprep.mubr.f32.mxu0 0.0
    %670 = vmatmul.mubr.f32.gmra.mxu0 %v588
    %v671 = vpop.f32.mrf.mxu0
    %v672 = vadd.f32 %v575, %v671
    %v673 = vpop.f32.mrf.mxu0
    %v674 = vadd.f32 %v575, %v673
    %675 = vmatprep.mubr.f32.mxu0 0.0
    %676 = vmatmul.mubr.f32.gmra.mxu0 %v591
    %v677 = vpop.f32.mrf.mxu0
    %v678 = vadd.f32 %v579, %v677
    %v679 = vpop.f32.mrf.mxu0
    %v680 = vadd.f32 %v579, %v679
    %681 = vdwg.mxu0
    %v682 = vadd.f32 %v660, %v666
    %v683 = vadd.f32 %v682, %v672
    %v684 = vadd.f32 %v683, %v678
    %v685 = vrot.slane %v684, 4
    %v686 = vadd.f32 %v684, %v685
    %v687 = vrot.slane %v686, 2
    %v688 = vadd.f32 %v686, %v687
    %v689 = vrot.slane %v688, 1
    %v690 = vadd.f32 %v688, %v689
    %v691 = vadd.f32 %v662, %v668
    %v692 = vadd.f32 %v691, %v674
    %v693 = vadd.f32 %v692, %v680
    %v694 = vrot.slane %v693, 4
    %v695 = vadd.f32 %v693, %v694
    %v696 = vrot.slane %v695, 2
    %v697 = vadd.f32 %v695, %v696
    %v698 = vrot.slane %v697, 1
    %v699 = vadd.f32 %v697, %v698
    %v700 = vmul.f32 %v690, %v208
    %v701 = vmul.f32 %v699, %v208
    %v702 = vsub.f32 %v660, %v700
    %v703 = vsub.f32 %v662, %v701
    %v704 = vsub.f32 %v666, %v700
    %v705 = vsub.f32 %v668, %v701
    %v706 = vsub.f32 %v672, %v700
    %v707 = vsub.f32 %v674, %v701
    %v708 = vsub.f32 %v678, %v700
    %v709 = vsub.f32 %v680, %v701
    %v710 = vmul.f32 %v702, %v702
    %v711 = vmul.f32 %v703, %v703
    %v712 = vmul.f32 %v704, %v704
    %v713 = vmul.f32 %v705, %v705
    %v714 = vmul.f32 %v706, %v706
    %v715 = vmul.f32 %v707, %v707
    %v716 = vmul.f32 %v708, %v708
    %v717 = vmul.f32 %v709, %v709
    %v718 = vadd.f32 %v710, %v712
    %v719 = vadd.f32 %v718, %v714
    %v720 = vadd.f32 %v719, %v716
    %v721 = vrot.slane %v720, 4
    %v722 = vadd.f32 %v720, %v721
    %v723 = vrot.slane %v722, 2
    %v724 = vadd.f32 %v722, %v723
    %v725 = vrot.slane %v724, 1
    %v726 = vadd.f32 %v724, %v725
    %v727 = vadd.f32 %v711, %v713
    %v728 = vadd.f32 %v727, %v715
    %v729 = vadd.f32 %v728, %v717
    %v730 = vrot.slane %v729, 4
    %v731 = vadd.f32 %v729, %v730
    %v732 = vrot.slane %v731, 2
    %v733 = vadd.f32 %v731, %v732
    %v734 = vrot.slane %v733, 1
    %v735 = vadd.f32 %v733, %v734
    %v736 = vmul.f32 %v726, %v208
    %v737 = vmul.f32 %v735, %v208
    %v738 = vadd.f32 %v736, 1e-05
    %v739 = vadd.f32 %v737, 1e-05
    %v740 = vrsqrt.pop %v738
    %v741 = vrsqrt.pop %v739
    %v742 = vmul.f32 %v702, %v740
    %v743 = vmul.f32 %v703, %v741
    %v744 = vmul.f32 %v704, %v740
    %v745 = vmul.f32 %v705, %v741
    %v746 = vmul.f32 %v706, %v740
    %v747 = vmul.f32 %v707, %v741
    %v748 = vmul.f32 %v708, %v740
    %v749 = vmul.f32 %v709, %v741
    %750 = vset.pattern.permute.xlu0 7
    %751 = vperm.xlu0 %750, %v60
    %v752 = vpop.permute.xlu0 %751
    %754 = vset.pattern.permute.xlu0 7
    %755 = vperm.xlu0 %754, %v61
    %v756 = vpop.permute.xlu0 %755
    %758 = vset.pattern.permute.xlu0 7
    %759 = vperm.xlu0 %758, %v62
    %v760 = vpop.permute.xlu0 %759
    %762 = vset.pattern.permute.xlu0 7
    %763 = vperm.xlu0 %762, %v63
    %v764 = vpop.permute.xlu0 %763
    %v766 = vmul.f32 %v742, %v752
    %v767 = vmul.f32 %v743, %v752
    %v768 = vmul.f32 %v744, %v756
    %v769 = vmul.f32 %v745, %v756
    %v770 = vmul.f32 %v746, %v760
    %v771 = vmul.f32 %v747, %v760
    %v772 = vmul.f32 %v748, %v764
    %v773 = vmul.f32 %v749, %v764
    %774 = vset.pattern.permute.xlu0 8
    %775 = vperm.xlu0 %774, %v60
    %v776 = vpop.permute.xlu0 %775
    %778 = vset.pattern.permute.xlu0 8
    %779 = vperm.xlu0 %778, %v61
    %v780 = vpop.permute.xlu0 %779
    %782 = vset.pattern.permute.xlu0 8
    %783 = vperm.xlu0 %782, %v62
    %v784 = vpop.permute.xlu0 %783
    %786 = vset.pattern.permute.xlu0 8
    %787 = vperm.xlu0 %786, %v63
    %v788 = vpop.permute.xlu0 %787
    %v790 = vadd.f32 %v766, %v776
    %v791 = vadd.f32 %v767, %v776
    %v792 = vadd.f32 %v768, %v780
    %v793 = vadd.f32 %v769, %v780
    %v794 = vadd.f32 %v770, %v784
    %v795 = vadd.f32 %v771, %v784
    %v796 = vadd.f32 %v772, %v788
    %v797 = vadd.f32 %v773, %v788
    %v798 = vmax.f32 %v790, 0.0
    %v799 = vmax.f32 %v791, 0.0
    %v800 = vmax.f32 %v792, 0.0
    %v801 = vmax.f32 %v793, 0.0
    %v802 = vmax.f32 %v794, 0.0
    %v803 = vmax.f32 %v795, 0.0
    %v804 = vmax.f32 %v796, 0.0
    %v805 = vmax.f32 %v797, 0.0
    %v806 = vld [vmem:[#allocation2] sm:$0xff]
    %v807 = vld [vmem:[#allocation2 + $0x8] sm:$0xff]
    %v808 = vld [vmem:[#allocation2 + $0x10] sm:$0xff]
    %v809 = vld [vmem:[#allocation2 + $0x18] sm:$0xff]
    %810 = vset.pattern.permute.xlu0 9
    %811 = vperm.xlu0 %810, %v60
    %v812 = vpop.permute.xlu0 %811
    %814 = vset.pattern.permute.xlu0 9
    %815 = vperm.xlu0 %814, %v61
    %v816 = vpop.permute.xlu0 %815
    %818 = vset.pattern.permute.xlu0 9
    %819 = vperm.xlu0 %818, %v62
    %v820 = vpop.permute.xlu0 %819
    %822 = vset.pattern.permute.xlu0 9
    %823 = vperm.xlu0 %822, %v63
    %v824 = vpop.permute.xlu0 %823
    %v827 = vsel %vm335, %v806, 0
    %v830 = vsel %vm335, %v807, 0
    %v833 = vsel %vm335, %v808, 0
    %v836 = vsel %vm335, %v809, 0
    %838 = vmatprep.subr.mxu0 0.0
    %839 = vmatpush1.msra.mxu0 0.0
    %840 = vmatprep.subr.mxu0 0.0
    %841 = vmatpush1.msra.mxu0 0.0
    %842 = vmatprep.subr.mxu0 0.0
    %843 = vmatpush1.msra.mxu0 0.0
    %844 = vmatprep.subr.mxu0 0.0
    %845 = vmatpush1.msra.mxu0 0.0
    %846 = vmatprep.subr.mxu0 0.0
    %847 = vmatpush1.msra.mxu0 0.0
    %848 = vmatprep.subr.mxu0 0.0
    %849 = vmatpush1.msra.mxu0 0.0
    %850 = vmatprep.subr.mxu0 0.0
    %851 = vmatpush1.msra.mxu0 0.0
    %852 = vmatprep.subr.mxu0 0.0
    %853 = vmatpush1.msra.mxu0 0.0
    %854 = vmatprep.subr.mxu0 0.0
    %855 = vmatpush1.msra.mxu0 0.0
    %856 = vmatprep.subr.mxu0 0.0
    %857 = vmatpush1.msra.mxu0 0.0
    %858 = vmatprep.subr.mxu0 0.0
    %859 = vmatpush1.msra.mxu0 0.0
    %860 = vmatprep.subr.mxu0 0.0
    %861 = vmatpush1.msra.mxu0 0.0
    %862 = vmatprep.subr.mxu0 %v805
    %863 = vmatpush1.msra.mxu0 %v804
    %864 = vmatprep.subr.mxu0 %v803
    %865 = vmatpush1.msra.mxu0 %v802
    %866 = vmatprep.subr.mxu0 %v801
    %867 = vmatpush1.msra.mxu0 %v800
    %868 = vmatprep.subr.mxu0 %v799
    %869 = vmatpush1.msra.mxu0 %v798
    %870 = vmatprep.subr.mxu0 0.0
    %871 = vmatpush2.msra.mxu0 0.0
    %872 = vmatprep.subr.mxu0 0.0
    %873 = vmatpush2.msra.mxu0 0.0
    %874 = vmatprep.subr.mxu0 0.0
    %875 = vmatpush2.msra.mxu0 0.0
    %876 = vmatprep.subr.mxu0 0.0
    %877 = vmatpush2.msra.mxu0 0.0
    %878 = vmatprep.subr.mxu0 0.0
    %879 = vmatpush2.msra.mxu0 0.0
    %880 = vmatprep.subr.mxu0 0.0
    %881 = vmatpush2.msra.mxu0 0.0
    %882 = vmatprep.subr.mxu0 0.0
    %883 = vmatpush2.msra.mxu0 0.0
    %884 = vmatprep.subr.mxu0 0.0
    %885 = vmatpush2.msra.mxu0 0.0
    %886 = vmatprep.subr.mxu0 0.0
    %887 = vmatpush2.msra.mxu0 0.0
    %888 = vmatprep.subr.mxu0 0.0
    %889 = vmatpush2.msra.mxu0 0.0
    %890 = vmatprep.subr.mxu0 0.0
    %891 = vmatpush2.msra.mxu0 0.0
    %892 = vmatprep.subr.mxu0 0.0
    %893 = vmatpush2.msra.mxu0 0.0
    %894 = vmatprep.subr.mxu0 0.0
    %895 = vmatpush2.msra.mxu0 0.0
    %896 = vmatprep.subr.mxu0 0.0
    %897 = vmatpush2.msra.mxu0 0.0
    %898 = vmatprep.subr.mxu0 0.0
    %899 = vmatpush2.msra.mxu0 0.0
    %900 = vmatprep.subr.mxu0 0.0
    %901 = vmatpush2.msra.mxu0 0.0
    %902 = vmatprep.mubr.f32.mxu0 0.0
    %903 = vmatmul.mubr.f32.gmra.mxu0 %v827
    %v904 = vpop.f32.mrf.mxu0
    %v905 = vadd.f32 %v812, %v904
    %v906 = vpop.f32.mrf.mxu0
    %v907 = vadd.f32 %v812, %v906
    %908 = vmatprep.mubr.f32.mxu0 0.0
    %909 = vmatmul.mubr.f32.gmra.mxu0 %v830
    %v910 = vpop.f32.mrf.mxu0
    %v911 = vadd.f32 %v816, %v910
    %v912 = vpop.f32.mrf.mxu0
    %v913 = vadd.f32 %v816, %v912
    %914 = vmatprep.mubr.f32.mxu0 0.0
    %915 = vmatmul.mubr.f32.gmra.mxu0 %v833
    %v916 = vpop.f32.mrf.mxu0
    %v917 = vadd.f32 %v820, %v916
    %v918 = vpop.f32.mrf.mxu0
    %v919 = vadd.f32 %v820, %v918
    %920 = vmatprep.mubr.f32.mxu0 0.0
    %921 = vmatmul.mubr.f32.gmra.mxu0 %v836
    %v922 = vpop.f32.mrf.mxu0
    %v923 = vadd.f32 %v824, %v922
    %v924 = vpop.f32.mrf.mxu0
    %v925 = vadd.f32 %v824, %v924
    %926 = vdwg.mxu0
    %v927 = vadd.f32 %v905, %v911
    %v928 = vadd.f32 %v927, %v917
    %v929 = vadd.f32 %v928, %v923
    %v930 = vrot.slane %v929, 4
    %v931 = vadd.f32 %v929, %v930
    %v932 = vrot.slane %v931, 2
    %v933 = vadd.f32 %v931, %v932
    %v934 = vrot.slane %v933, 1
    %v935 = vadd.f32 %v933, %v934
    %v936 = vadd.f32 %v907, %v913
    %v937 = vadd.f32 %v936, %v919
    %v938 = vadd.f32 %v937, %v925
    %v939 = vrot.slane %v938, 4
    %v940 = vadd.f32 %v938, %v939
    %v941 = vrot.slane %v940, 2
    %v942 = vadd.f32 %v940, %v941
    %v943 = vrot.slane %v942, 1
    %v944 = vadd.f32 %v942, %v943
    %v945 = vmul.f32 %v935, %v208
    %v946 = vmul.f32 %v944, %v208
    %v947 = vsub.f32 %v905, %v945
    %v948 = vsub.f32 %v907, %v946
    %v949 = vsub.f32 %v911, %v945
    %v950 = vsub.f32 %v913, %v946
    %v951 = vsub.f32 %v917, %v945
    %v952 = vsub.f32 %v919, %v946
    %v953 = vsub.f32 %v923, %v945
    %v954 = vsub.f32 %v925, %v946
    %v955 = vmul.f32 %v947, %v947
    %v956 = vmul.f32 %v948, %v948
    %v957 = vmul.f32 %v949, %v949
    %v958 = vmul.f32 %v950, %v950
    %v959 = vmul.f32 %v951, %v951
    %v960 = vmul.f32 %v952, %v952
    %v961 = vmul.f32 %v953, %v953
    %v962 = vmul.f32 %v954, %v954
    %v963 = vadd.f32 %v955, %v957
    %v964 = vadd.f32 %v963, %v959
    %v965 = vadd.f32 %v964, %v961
    %v966 = vrot.slane %v965, 4
    %v967 = vadd.f32 %v965, %v966
    %v968 = vrot.slane %v967, 2
    %v969 = vadd.f32 %v967, %v968
    %v970 = vrot.slane %v969, 1
    %v971 = vadd.f32 %v969, %v970
    %v972 = vadd.f32 %v956, %v958
    %v973 = vadd.f32 %v972, %v960
    %v974 = vadd.f32 %v973, %v962
    %v975 = vrot.slane %v974, 4
    %v976 = vadd.f32 %v974, %v975
    %v977 = vrot.slane %v976, 2
    %v978 = vadd.f32 %v976, %v977
    %v979 = vrot.slane %v978, 1
    %v980 = vadd.f32 %v978, %v979
    %v981 = vmul.f32 %v971, %v208
    %v982 = vmul.f32 %v980, %v208
    %v983 = vadd.f32 %v981, 1e-05
    %v984 = vadd.f32 %v982, 1e-05
    %v985 = vrsqrt.pop %v983
    %v986 = vrsqrt.pop %v984
    %v987 = vmul.f32 %v947, %v985
    %v988 = vmul.f32 %v948, %v986
    %v989 = vmul.f32 %v949, %v985
    %v990 = vmul.f32 %v950, %v986
    %v991 = vmul.f32 %v951, %v985
    %v992 = vmul.f32 %v952, %v986
    %v993 = vmul.f32 %v953, %v985
    %v994 = vmul.f32 %v954, %v986
    %995 = vset.pattern.permute.xlu0 10
    %996 = vperm.xlu0 %995, %v60
    %v997 = vpop.permute.xlu0 %996
    %999 = vset.pattern.permute.xlu0 10
    %1000 = vperm.xlu0 %999, %v61
    %v1001 = vpop.permute.xlu0 %1000
    %1003 = vset.pattern.permute.xlu0 10
    %1004 = vperm.xlu0 %1003, %v62
    %v1005 = vpop.permute.xlu0 %1004
    %1007 = vset.pattern.permute.xlu0 10
    %1008 = vperm.xlu0 %1007, %v63
    %v1009 = vpop.permute.xlu0 %1008
    %v1011 = vmul.f32 %v987, %v997
    %v1012 = vmul.f32 %v988, %v997
    %v1013 = vmul.f32 %v989, %v1001
    %v1014 = vmul.f32 %v990, %v1001
    %v1015 = vmul.f32 %v991, %v1005
    %v1016 = vmul.f32 %v992, %v1005
    %v1017 = vmul.f32 %v993, %v1009
    %v1018 = vmul.f32 %v994, %v1009
    %1019 = vset.pattern.permute.xlu0 11
    %1020 = vperm.xlu0 %1019, %v60
    %v1021 = vpop.permute.xlu0 %1020
    %1023 = vset.pattern.permute.xlu0 11
    %1024 = vperm.xlu0 %1023, %v61
    %v1025 = vpop.permute.xlu0 %1024
    %1027 = vset.pattern.permute.xlu0 11
    %1028 = vperm.xlu0 %1027, %v62
    %v1029 = vpop.permute.xlu0 %1028
    %1031 = vset.pattern.permute.xlu0 11
    %1032 = vperm.xlu0 %1031, %v63
    %v1033 = vpop.permute.xlu0 %1032
    %v1035 = vadd.f32 %v1011, %v1021
    %v1036 = vadd.f32 %v1012, %v1021
    %v1037 = vadd.f32 %v1013, %v1025
    %v1038 = vadd.f32 %v1014, %v1025
    %v1039 = vadd.f32 %v1015, %v1029
    %v1040 = vadd.f32 %v1016, %v1029
    %v1041 = vadd.f32 %v1017, %v1033
    %v1042 = vadd.f32 %v1018, %v1033
    %v1043 = vmax.f32 %v1035, 0.0
    %v1044 = vmax.f32 %v1036, 0.0
    %v1045 = vmax.f32 %v1037, 0.0
    %v1046 = vmax.f32 %v1038, 0.0
    %v1047 = vmax.f32 %v1039, 0.0
    %v1048 = vmax.f32 %v1040, 0.0
    %v1049 = vmax.f32 %v1041, 0.0
    %v1050 = vmax.f32 %v1042, 0.0
    %v1051 = vld [vmem:[#allocation5] sm:$0xff]
    %v1052 = vld [vmem:[%s7] sm:$0xff]
    %1054 = vset.pattern.permute.xlu0 0
    %1055 = vperm.xlu0 %1054, %v1052
    %v1056 = vpop.permute.xlu0 %1055
    %v1059 = vsel %vm335, %v1051, 0
    %1061 = vmatprep.subr.mxu0 0.0
    %1062 = vmatpush1.msra.mxu0 0.0
    %1063 = vmatprep.subr.mxu0 0.0
    %1064 = vmatpush1.msra.mxu0 0.0
    %1065 = vmatprep.subr.mxu0 0.0
    %1066 = vmatpush1.msra.mxu0 0.0
    %1067 = vmatprep.subr.mxu0 0.0
    %1068 = vmatpush1.msra.mxu0 0.0
    %1069 = vmatprep.subr.mxu0 0.0
    %1070 = vmatpush1.msra.mxu0 0.0
    %1071 = vmatprep.subr.mxu0 0.0
    %1072 = vmatpush1.msra.mxu0 0.0
    %1073 = vmatprep.subr.mxu0 0.0
    %1074 = vmatpush1.msra.mxu0 0.0
    %1075 = vmatprep.subr.mxu0 0.0
    %1076 = vmatpush1.msra.mxu0 0.0
    %1077 = vmatprep.subr.mxu0 0.0
    %1078 = vmatpush1.msra.mxu0 0.0
    %1079 = vmatprep.subr.mxu0 0.0
    %1080 = vmatpush1.msra.mxu0 0.0
    %1081 = vmatprep.subr.mxu0 0.0
    %1082 = vmatpush1.msra.mxu0 0.0
    %1083 = vmatprep.subr.mxu0 0.0
    %1084 = vmatpush1.msra.mxu0 0.0
    %1085 = vmatprep.subr.mxu0 %v1050
    %1086 = vmatpush1.msra.mxu0 %v1049
    %1087 = vmatprep.subr.mxu0 %v1048
    %1088 = vmatpush1.msra.mxu0 %v1047
    %1089 = vmatprep.subr.mxu0 %v1046
    %1090 = vmatpush1.msra.mxu0 %v1045
    %1091 = vmatprep.subr.mxu0 %v1044
    %1092 = vmatpush1.msra.mxu0 %v1043
    %1093 = vmatprep.subr.mxu0 0.0
    %1094 = vmatpush2.msra.mxu0 0.0
    %1095 = vmatprep.subr.mxu0 0.0
    %1096 = vmatpush2.msra.mxu0 0.0
    %1097 = vmatprep.subr.mxu0 0.0
    %1098 = vmatpush2.msra.mxu0 0.0
    %1099 = vmatprep.subr.mxu0 0.0
    %1100 = vmatpush2.msra.mxu0 0.0
    %1101 = vmatprep.subr.mxu0 0.0
    %1102 = vmatpush2.msra.mxu0 0.0
    %1103 = vmatprep.subr.mxu0 0.0
    %1104 = vmatpush2.msra.mxu0 0.0
    %1105 = vmatprep.subr.mxu0 0.0
    %1106 = vmatpush2.msra.mxu0 0.0
    %1107 = vmatprep.subr.mxu0 0.0
    %1108 = vmatpush2.msra.mxu0 0.0
    %1109 = vmatprep.subr.mxu0 0.0
    %1110 = vmatpush2.msra.mxu0 0.0
    %1111 = vmatprep.subr.mxu0 0.0
    %1112 = vmatpush2.msra.mxu0 0.0
    %1113 = vmatprep.subr.mxu0 0.0
    %1114 = vmatpush2.msra.mxu0 0.0
    %1115 = vmatprep.subr.mxu0 0.0
    %1116 = vmatpush2.msra.mxu0 0.0
    %1117 = vmatprep.subr.mxu0 0.0
    %1118 = vmatpush2.msra.mxu0 0.0
    %1119 = vmatprep.subr.mxu0 0.0
    %1120 = vmatpush2.msra.mxu0 0.0
    %1121 = vmatprep.subr.mxu0 0.0
    %1122 = vmatpush2.msra.mxu0 0.0
    %1123 = vmatprep.subr.mxu0 0.0
    %1124 = vmatpush2.msra.mxu0 0.0
    %1125 = vmatprep.mubr.f32.mxu0 0.0
    %1126 = vmatmul.mubr.f32.gmra.mxu0 %v1059
    %v1127 = vpop.f32.mrf.mxu0
    %v1128 = vadd.f32 %v1056, %v1127
    %v1129 = vpop.f32.mrf.mxu0
    %v1130 = vadd.f32 %v1056, %v1129
    %1131 = vdwg.mxu0
    %1132 = vst [vmem:[#allocation7] sm:$0xff] %v1128
    %1133 = vst [vmem:[#allocation7 + $0x8] sm:$0xff] %v1130
    // Predicated region
    $region42: #{tpu_custom_call.1} parent=1 // pred_check
      _
    $region43: #{tpu_custom_call.1} parent=1 // pred_check_branch
      %1135 = sbr.rel (0) target = $region45
    $region44: #{tpu_custom_call.1} parent=1 // pred_region
      %s1137 = ssub.s32 256, 256
      %1138 = vsyncadd [#allocation4], %s1137
      %s1140 = sshll.u32 [#allocation7], 4
      %s1141 = int_to_ptr.vmem [resolvable:$true] %s1140
      %1143 = dma.vmem_to_hbm [thread:$0]  %s1141, 256, %s8, [#allocation4]
    $region45: #{tpu_custom_call.1} parent=1 // pred_fallthru
      _
    // Predicated region
    $region46: #{tpu_custom_call.1} parent=1 // pred_check
      _
    $region47: #{tpu_custom_call.1} parent=1 // pred_check_branch
      %1145 = sbr.rel (0) target = $region49
    $region48: #{tpu_custom_call.1} parent=1 // pred_region
      %1146 = dma.done [#allocation4], 256
    $region49: #{tpu_custom_call.1} parent=1 // pred_fallthru
      _
    %1147 = vsyncpa [#allocation3], 1
    %1148 = vsyncpa [#allocation6], 1
    %1149 = vsyncpa [#allocation4], 1

</llo_original>
